<compile_context>
chip_gen: v7x
topology: tpu7x:2x2x1
jax: 0.10.0
libtpu: 0.0.40
codegen_flags: <defaults>
</compile_context>

<pallas_src>
import functools

import jax
import jax.numpy as jnp
from jax import lax
from jax.experimental import pallas as pl
from jax.experimental.pallas import tpu as pltpu


# ----------------------------------------------------------------------------
# Fused kernel: im2col-conv + bias + ReLU + global avg pool + linear head.
#   grid = (1,)  -- whole (tiny) batch in one step, everything in VMEM.
#   p_ref  : (K, B*HW)              bf16  im2col patches (K = 9*Cin)
#   w_ref  : (Cout, K + n_classes)  bf16  [conv weight | head weight] slab
#   pf_ref : (Cout, 1 + n_classes)  f32   col 0 = conv bias, row 0 cols 1: = fc bias
#   o_ref  : (B, n_classes)         bf16  logits (only HBM write)
# ----------------------------------------------------------------------------
def fused_kernel(p_ref, w_ref, pf_ref, o_ref, *, conv_k, hw, batch):
    w2 = w_ref[:, :conv_k]                 # (Cout, K)         bf16
    fcw = w_ref[:, conv_k:]                # (Cout, n_classes) bf16
    bconv = pf_ref[:, 0:1]                 # (Cout, 1)         f32
    fcb = pf_ref[0:1, 1:]                  # (1, n_classes)    f32

    # conv for the whole batch as ONE MXU matmul; B*HW lanes, f32 accumulate.
    y = jnp.dot(w2, p_ref[...], preferred_element_type=jnp.float32)  # (Cout, B*HW)
    y = jnp.maximum(y + bconv, 0.0)        # bias + ReLU in f32 (v5e-safe)

    # global average pool per image: split lanes into (B, HW), reduce over HW.
    cout = y.shape[0]
    pooled_t = jnp.mean(y.reshape(cout, batch, hw), axis=-1)         # (Cout, B) f32

    # head: contract Cout (dim 0 of both) -> (B, n_classes); bf16 MXU inputs.
    logits = lax.dot_general(
        pooled_t.astype(jnp.bfloat16), fcw,
        dimension_numbers=(((0,), (0,)), ((), ())),
        preferred_element_type=jnp.float32)                          # (B, n_classes)
    o_ref[...] = (logits + fcb).astype(o_ref.dtype)


def trace_wrape_forward(x_nchw, conv_w, conv_b, fc_w, fc_b):
    """Forward pass of TraceWrape(inner_model)(x) with autocast-like precision."""
    B, Cin, H, W = x_nchw.shape
    Cout = conv_w.shape[0]
    n_classes = fc_w.shape[1]
    HW = H * W
    K = 9 * Cin

    # --- glue (plain XLA): im2col straight from NCHW ----------------------
    # One tiny transpose of the input (swap B<->Cin) so the patch tensor is
    # born in (K, B*HW) layout -- no transposes of the 36 KB patch tensor.
    x_bf = x_nchw.astype(jnp.bfloat16)                               # autocast cast
    x_cb = jnp.transpose(x_bf, (1, 0, 2, 3))                         # (Cin, B, H, W)
    x_pad = jnp.pad(x_cb, ((0, 0), (0, 0), (1, 1), (1, 1)))
    taps = [x_pad[:, :, kh:kh + H, kw:kw + W]                        # 9 x (Cin, B, H, W)
            for kh in range(3) for kw in range(3)]
    p = jnp.stack(taps, axis=0).reshape(K, B * HW)                   # (K, B*HW) bf16

    # conv weight (Cout, Cin, 3, 3) -> (Cout, kh, kw, Cin) -> (Cout, 9*Cin)
    # (K ordering (kh, kw, Cin) matches the tap stacking above)
    w2 = jnp.transpose(conv_w, (0, 2, 3, 1)).reshape(Cout, K).astype(jnp.bfloat16)
    fcw = fc_w.astype(jnp.bfloat16)
    wslab = jnp.concatenate([w2, fcw], axis=1)                       # (Cout, K+nc) bf16

    pslab = jnp.zeros((Cout, 1 + n_classes), jnp.float32)            # f32 bias slab
    pslab = pslab.at[:, 0].set(conv_b.astype(jnp.float32))
    pslab = pslab.at[0, 1:].set(fc_b.astype(jnp.float32))

    kernel = functools.partial(fused_kernel, conv_k=K, hw=HW, batch=B)

    # single launch, single grid step; ~0.2 MiB total, fits every generation's
    # VMEM with huge headroom (re-derive block sizes before scaling on v7x).
    logits = pl.pallas_call(
        kernel,
        out_shape=jax.ShapeDtypeStruct((B, n_classes), jnp.bfloat16),
        grid=(1,),
        in_specs=[
            pl.BlockSpec((K, B * HW), lambda i: (0, 0)),
            pl.BlockSpec((Cout, K + n_classes), lambda i: (0, 0)),
            pl.BlockSpec((Cout, 1 + n_classes), lambda i: (0, 0)),
        ],
        out_specs=pl.BlockSpec((B, n_classes), lambda i: (0, 0)),
        compiler_params=pltpu.CompilerParams(
            dimension_semantics=("arbitrary",)),
    )(p, wslab, pslab)
    return logits


def _reference_forward(x, conv_w, conv_b, fc_w, fc_b):
    """Pure-JAX f32 reference of the same inner model."""
    y = lax.conv_general_dilated(
        x, conv_w, window_strides=(1, 1), padding="SAME",
        dimension_numbers=("NCHW", "OIHW", "NCHW"))
    y = jax.nn.relu(y + conv_b[None, :, None, None])
    pooled = jnp.mean(y, axis=(2, 3))
    return pooled @ fc_w + fc_b[None, :]


if __name__ == "__main__":
    B, Cin, H, W = 2, 4, 16, 16
    Cout, n_classes = 8, 10

    key = jax.random.PRNGKey(0)
    kx, kw1, kb1, kw2, kb2 = jax.random.split(key, 5)

    x = jax.random.normal(kx, (B, Cin, H, W), dtype=jnp.float32)
    # deterministic synthetic parameters (PyTorch-like shapes)
    conv_w = jax.random.normal(kw1, (Cout, Cin, 3, 3), dtype=jnp.float32) * 0.1
    conv_b = jax.random.normal(kb1, (Cout,), dtype=jnp.float32) * 0.01
    fc_w = jax.random.normal(kw2, (Cout, n_classes), dtype=jnp.float32) * 0.1
    fc_b = jax.random.normal(kb2, (n_classes,), dtype=jnp.float32) * 0.01

    fwd = jax.jit(trace_wrape_forward)
    out = fwd(x, conv_w, conv_b, fc_w, fc_b)
    jax.block_until_ready(out)
    assert out.shape == (B, n_classes) and out.dtype == jnp.bfloat16

    # loose tolerance: kernel path uses bf16 matmul inputs (autocast analog)
    ref = _reference_forward(x, conv_w, conv_b, fc_w, fc_b)
    assert jnp.allclose(out.astype(jnp.float32), ref, atol=5e-2, rtol=5e-2)

    print("KERNEL_OK")
</pallas_src>

<mosaic_0001>
module attributes {stable_mosaic.version = 11 : i64} {
  func.func @fused_kernel(%arg0: i32, %arg1: memref<36x512xbf16, #tpu.memory_space<vmem>>, %arg2: memref<8x46xbf16, #tpu.memory_space<vmem>>, %arg3: memref<8x11xf32, #tpu.memory_space<vmem>>, %arg4: memref<2x10xbf16, #tpu.memory_space<vmem>>) attributes {dimension_semantics = [#tpu.dimension_semantics<arbitrary>], iteration_bounds = array<i64: 1>, scalar_prefetch = 0 : i64, scratch_operands = 0 : i64, tpu.core_type = #tpu.core_type<tc>, window_params = [{pipeline_mode = #tpu.pipeline_mode<synchronous>, transform_indices = @transform_0, window_bounds = array<i64: 36, 512>}, {pipeline_mode = #tpu.pipeline_mode<synchronous>, transform_indices = @transform_1, window_bounds = array<i64: 8, 46>}, {pipeline_mode = #tpu.pipeline_mode<synchronous>, transform_indices = @transform_2, window_bounds = array<i64: 8, 11>}, {pipeline_mode = #tpu.pipeline_mode<synchronous>, transform_indices = @transform_3, window_bounds = array<i64: 2, 10>}]} {
    %c0 = arith.constant 0 : index
    %c0_0 = arith.constant 0 : index
    %0 = vector.load %arg2[%c0, %c0_0] : memref<8x46xbf16, #tpu.memory_space<vmem>>, vector<8x36xbf16>
    %c0_1 = arith.constant 0 : index
    %c36 = arith.constant 36 : index
    %1 = vector.load %arg2[%c0_1, %c36] : memref<8x46xbf16, #tpu.memory_space<vmem>>, vector<8x10xbf16>
    %c0_2 = arith.constant 0 : index
    %c0_3 = arith.constant 0 : index
    %2 = vector.load %arg3[%c0_2, %c0_3] : memref<8x11xf32, #tpu.memory_space<vmem>>, vector<8x1xf32>
    %c0_4 = arith.constant 0 : index
    %c1 = arith.constant 1 : index
    %3 = vector.load %arg3[%c0_4, %c1] : memref<8x11xf32, #tpu.memory_space<vmem>>, vector<1x10xf32>
    %c0_5 = arith.constant 0 : index
    %c0_6 = arith.constant 0 : index
    %4 = vector.load %arg1[%c0_5, %c0_6] : memref<36x512xbf16, #tpu.memory_space<vmem>>, vector<36x512xbf16>
    %cst = arith.constant dense<0.000000e+00> : vector<8x512xf32>
    %5 = tpu.matmul %0, %4, %cst {dimension_numbers = #tpu.dot_dimension_numbers<[1], [0], [0], [1], [0, 0, 1, 1], [], []>} : vector<8x36xbf16>, vector<36x512xbf16>, vector<8x512xf32> -> vector<8x512xf32>
    %6 = vector.broadcast %2 : vector<8x1xf32> to vector<8x512xf32>
    %7 = arith.addf %5, %6 : vector<8x512xf32>
    %cst_7 = arith.constant 0.000000e+00 : f32
    %8 = vector.broadcast %cst_7 : f32 to vector<8x512xf32>
    %9 = arith.maximumf %7, %8 : vector<8x512xf32>
    %10 = vector.shape_cast %9 : vector<8x512xf32> to vector<8x2x256xf32>
    %cst_8 = arith.constant dense<0.000000e+00> : vector<8x2xf32>
    %11 = vector.multi_reduction <add>, %10, %cst_8 [2] : vector<8x2x256xf32> to vector<8x2xf32>
    %cst_9 = arith.constant 2.560000e+02 : f32
    %12 = vector.broadcast %cst_9 : f32 to vector<8x2xf32>
    %13 = arith.divf %11, %12 : vector<8x2xf32>
    %14 = arith.truncf %13 : vector<8x2xf32> to vector<8x2xbf16>
    %cst_10 = arith.constant dense<0.000000e+00> : vector<2x10xf32>
    %15 = tpu.matmul %14, %1, %cst_10 {dimension_numbers = #tpu.dot_dimension_numbers<[0], [0], [1], [1], [0, 1, 1, 1], [], []>} : vector<8x2xbf16>, vector<8x10xbf16>, vector<2x10xf32> -> vector<2x10xf32>
    %16 = vector.broadcast %3 : vector<1x10xf32> to vector<2x10xf32>
    %17 = arith.addf %15, %16 : vector<2x10xf32>
    %18 = arith.truncf %17 : vector<2x10xf32> to vector<2x10xbf16>
    %c0_11 = arith.constant 0 : index
    %c0_12 = arith.constant 0 : index
    %19 = vector.load %arg4[%c0_11, %c0_12] : memref<2x10xbf16, #tpu.memory_space<vmem>>, vector<2x10xbf16>
    tpu.vector_store %arg4[%c0_11, %c0_12], %18 {strides = array<i32>} : memref<2x10xbf16, #tpu.memory_space<vmem>>, vector<2x10xbf16>,
    return
  }
  func.func @transform_0(%arg0: i32) -> (i32, i32) {
    %c0_i32 = arith.constant 0 : i32
    %c0_i32_0 = arith.constant 0 : i32
    %c0_i32_1 = arith.constant 0 : i32
    return %c0_i32, %c0_i32_0 : i32, i32
  }
  func.func @transform_1(%arg0: i32) -> (i32, i32) {
    %c0_i32 = arith.constant 0 : i32
    %c0_i32_0 = arith.constant 0 : i32
    %c0_i32_1 = arith.constant 0 : i32
    return %c0_i32, %c0_i32_0 : i32, i32
  }
  func.func @transform_2(%arg0: i32) -> (i32, i32) {
    %c0_i32 = arith.constant 0 : i32
    %c0_i32_0 = arith.constant 0 : i32
    %c0_i32_1 = arith.constant 0 : i32
    return %c0_i32, %c0_i32_0 : i32, i32
  }
  func.func @transform_3(%arg0: i32) -> (i32, i32) {
    %c0_i32 = arith.constant 0 : i32
    %c0_i32_0 = arith.constant 0 : i32
    %c0_i32_1 = arith.constant 0 : i32
    return %c0_i32, %c0_i32_0 : i32, i32
  }
}

</mosaic_0001>

<llo_original>
// kernel: trace_wrape_forward.1
$region0: #{trace_wrape_forward.1}
  #allocation0 [shape = 'u32[]', space=smem, size = 0x4, offset = 0x4, fixed_abs, tag = 'smem constant byte address 0x4 - core index']
  #allocation1 [shape = 'u32[144,128]{1,0:T(1,128)}', space=vmem, size = 0x12000, scoped, tag = 'internal scratch']
  %s0 = inlined_call_operand.vmem [shape: bf16[36,512], index: 0, kind: input, shape index: {}]
  %s1 = inlined_call_operand.vmem [shape: bf16[8,46], index: 1, kind: input, shape index: {}]
  %s2 = inlined_call_operand.vmem [shape: f32[8,11], index: 2, kind: input, shape index: {}]
  %s3 = inlined_call_operand.hbm [shape: bf16[2,10], index: 3, kind: output, shape index: {}]
  %s4 = sld [smem:[#allocation0]]
  $region22: #{trace_wrape_forward.1} parent=0
    _
  %s6 = ssub.s32 1, %s4
  %s7 = scalar_select 0, %s6, %s4
  $region1: #{trace_wrape_forward.1} parent=0
    #allocation2 [shape = 'u8[512]{0}', space=vmem, size = 0x400, scoped, tag = 'output window, operand 0, single buffered']
    #allocation3 [shape = 's32[1]{0}', space=sflag, size = 0x4, scoped, tag = 'scoped memory for trace_wrape_forward.1']
    %8 = vsyncpa [#allocation3], 0
    // Predicated region
    $region2: #{trace_wrape_forward.1} parent=1 // pred_check
      _
    $region3: #{trace_wrape_forward.1} parent=1 // pred_check_branch
      %10 = sbr.rel (0) target = $region5
    $region4: #{trace_wrape_forward.1} parent=1 // pred_region
      _
    $region5: #{trace_wrape_forward.1} parent=1 // pred_fallthru
      _
    // Predicated region
    $region6: #{trace_wrape_forward.1} parent=1 // pred_check
      _
    $region7: #{trace_wrape_forward.1} parent=1 // pred_check_branch
      %12 = sbr.rel (0) target = $region9
    $region8: #{trace_wrape_forward.1} parent=1 // pred_region
      _
    $region9: #{trace_wrape_forward.1} parent=1 // pred_fallthru
      _
    // Predicated region
    $region10: #{trace_wrape_forward.1} parent=1 // pred_check
      _
    $region11: #{trace_wrape_forward.1} parent=1 // pred_check_branch
      %14 = sbr.rel (0) target = $region13
    $region12: #{trace_wrape_forward.1} parent=1 // pred_region
      _
    $region13: #{trace_wrape_forward.1} parent=1 // pred_fallthru
      _
    %v16 = vld [vmem:[%s1] sm:$0xf]
    %v17 = vld [vmem:[%s2] sm:$0xff]
    %v18 = vld [vmem:[%s2] sm:$0x1]
    %v19 = vld [vmem:[%s0] sm:$0xff]
    %v20 = vld [vmem:[%s0 + $0x8] sm:$0xff]
    %v21 = vld [vmem:[%s0 + $0x10] sm:$0xff]
    %v22 = vld [vmem:[%s0 + $0x18] sm:$0xff]
    %v23 = vld [vmem:[%s0 + $0x20] sm:$0xff]
    %v24 = vld [vmem:[%s0 + $0x28] sm:$0xff]
    %v25 = vld [vmem:[%s0 + $0x30] sm:$0xff]
    %v26 = vld [vmem:[%s0 + $0x38] sm:$0xff]
    %v27 = vld [vmem:[%s0 + $0x40] sm:$0x33]
    %v28 = vld [vmem:[%s0 + $0x48] sm:$0x33]
    %30 = vset.pattern.permute.xlu0 0
    %31 = vperm.xlu0 %30, %v17
    %v32 = vpop.permute.xlu0 %31
    %v44 = vunpack.c.l.b16 %v19
    %v45 = vunpack.c.h.b16 %v19
    %v46 = vunpack.c.l.b16 %v20
    %v47 = vunpack.c.h.b16 %v20
    %v48 = vunpack.c.l.b16 %v21
    %v49 = vunpack.c.h.b16 %v21
    %v50 = vunpack.c.l.b16 %v22
    %v51 = vunpack.c.h.b16 %v22
    %v52 = vunpack.c.l.b16 %v23
    %v53 = vunpack.c.h.b16 %v23
    %v54 = vunpack.c.l.b16 %v24
    %v55 = vunpack.c.h.b16 %v24
    %v56 = vunpack.c.l.b16 %v25
    %v57 = vunpack.c.h.b16 %v25
    %v58 = vunpack.c.l.b16 %v26
    %v59 = vunpack.c.h.b16 %v26
    %v60 = vunpack.c.l.b16 %v27
    %v61 = vunpack.c.h.b16 %v27
    %v62 = vunpack.c.l.b16 %v28
    %v63 = vunpack.c.h.b16 %v28
    %v64 = vpack.c.b16 %v48, %v44
    %v65 = vpack.c.b16 %v49, %v45
    %v66 = vpack.c.b16 %v50, %v46
    %v67 = vpack.c.b16 %v51, %v47
    %v68 = vpack.c.b16 %v56, %v52
    %v69 = vpack.c.b16 %v57, %v53
    %v70 = vpack.c.b16 %v58, %v54
    %v71 = vpack.c.b16 %v59, %v55
    %v72 = vpack.c.b16 %v60, %v60
    %v73 = vpack.c.b16 %v61, %v61
    %v74 = vpack.c.b16 %v62, %v62
    %v75 = vpack.c.b16 %v63, %v63
    %vm84 = vcmask 293888
    %v86 = vsel %vm84, %v16, 0
    %vm88 = vcmask 1041408
    %v90 = vsel %vm88, %v72, 0
    %v93 = vsel %vm88, %v73, 0
    %v96 = vsel %vm88, %v74, 0
    %v99 = vsel %vm88, %v75, 0
    %101 = vmatprep.subr.bf16.mxu0 %v65
    %102 = vmatpush1.bf16.msra.mxu0 %v64
    %103 = vmatprep.subr.bf16.mxu0 %v69
    %104 = vmatpush1.bf16.msra.mxu0 %v68
    %105 = vmatprep.subr.bf16.mxu0 %v93
    %106 = vmatpush1.bf16.msra.mxu0 %v90
    %107 = vmatprep.subr.bf16.mxu0 0
    %108 = vmatpush1.bf16.msra.mxu0 0
    %109 = vmatprep.subr.bf16.mxu0 0
    %110 = vmatpush1.bf16.msra.mxu0 0
    %111 = vmatprep.subr.bf16.mxu0 0
    %112 = vmatpush1.bf16.msra.mxu0 0
    %113 = vmatprep.subr.bf16.mxu0 0
    %114 = vmatpush1.bf16.msra.mxu0 0
    %115 = vmatprep.subr.bf16.mxu0 0
    %116 = vmatpush1.bf16.msra.mxu0 0
    %117 = vmatprep.subr.bf16.mxu0 0
    %118 = vmatpush1.bf16.msra.mxu0 0
    %119 = vmatprep.subr.bf16.mxu0 0
    %120 = vmatpush1.bf16.msra.mxu0 0
    %121 = vmatprep.subr.bf16.mxu0 0
    %122 = vmatpush1.bf16.msra.mxu0 0
    %123 = vmatprep.subr.bf16.mxu0 0
    %124 = vmatpush1.bf16.msra.mxu0 0
    %125 = vmatprep.subr.bf16.mxu0 0
    %126 = vmatpush1.bf16.msra.mxu0 0
    %127 = vmatprep.subr.bf16.mxu0 0
    %128 = vmatpush1.bf16.msra.mxu0 0
    %129 = vmatprep.subr.bf16.mxu0 0
    %130 = vmatpush1.bf16.msra.mxu0 0
    %131 = vmatprep.subr.bf16.mxu0 0
    %132 = vmatpush1.bf16.msra.mxu0 0
    %133 = vmatprep.mubr.bf16.mxu0 0
    %134 = vmatmul.mubr.bf16.gmra.mrb[0].mxu0 %v86
    %v135 = vpop.f32.mrb[0].mxu0
    %v136 = vadd.f32 %v32, %v135
    %v137 = vpop.f32.mrb[0].mxu0
    %v138 = vadd.f32 %v32, %v137
    %v139 = vpop.f32.mrb[0].mxu0
    %v140 = vpop.f32.mrb[0].mxu0
    %141 = vdwg.mxu0
    %142 = vmatprep.subr.bf16.mxu0 %v67
    %143 = vmatpush1.bf16.msra.mxu0 %v66
    %144 = vmatprep.subr.bf16.mxu0 %v71
    %145 = vmatpush1.bf16.msra.mxu0 %v70
    %146 = vmatprep.subr.bf16.mxu0 %v99
    %147 = vmatpush1.bf16.msra.mxu0 %v96
    %148 = vmatprep.subr.bf16.mxu0 0
    %149 = vmatpush1.bf16.msra.mxu0 0
    %150 = vmatprep.subr.bf16.mxu0 0
    %151 = vmatpush1.bf16.msra.mxu0 0
    %152 = vmatprep.subr.bf16.mxu0 0
    %153 = vmatpush1.bf16.msra.mxu0 0
    %154 = vmatprep.subr.bf16.mxu0 0
    %155 = vmatpush1.bf16.msra.mxu0 0
    %156 = vmatprep.subr.bf16.mxu0 0
    %157 = vmatpush1.bf16.msra.mxu0 0
    %158 = vmatprep.subr.bf16.mxu0 0
    %159 = vmatpush1.bf16.msra.mxu0 0
    %160 = vmatprep.subr.bf16.mxu0 0
    %161 = vmatpush1.bf16.msra.mxu0 0
    %162 = vmatprep.subr.bf16.mxu0 0
    %163 = vmatpush1.bf16.msra.mxu0 0
    %164 = vmatprep.subr.bf16.mxu0 0
    %165 = vmatpush1.bf16.msra.mxu0 0
    %166 = vmatprep.subr.bf16.mxu0 0
    %167 = vmatpush1.bf16.msra.mxu0 0
    %168 = vmatprep.subr.bf16.mxu0 0
    %169 = vmatpush1.bf16.msra.mxu0 0
    %170 = vmatprep.subr.bf16.mxu0 0
    %171 = vmatpush1.bf16.msra.mxu0 0
    %172 = vmatprep.subr.bf16.mxu0 0
    %173 = vmatpush1.bf16.msra.mxu0 0
    %174 = vmatprep.mubr.bf16.mxu0 0
    %175 = vmatmul.mubr.bf16.gmra.mrb[0].mxu0 %v86
    %v176 = vpop.f32.mrb[0].mxu0
    %v177 = vadd.f32 %v32, %v176
    %v178 = vpop.f32.mrb[0].mxu0
    %v179 = vadd.f32 %v32, %v178
    %v180 = vpop.f32.mrb[0].mxu0
    %v181 = vpop.f32.mrb[0].mxu0
    %182 = vdwg.mxu0
    %v183 = vmax.f32 %v136, 0.0
    %v184 = vmax.f32 %v138, 0.0
    %v185 = vmax.f32 %v177, 0.0
    %v186 = vmax.f32 %v179, 0.0
    %v187 = vcombine.high %v183, 0.0
    %v189 = vunpack.c.l.s4 1983009808
    %v190 = vunpack.c.0.s8 %v189
    %v191 = vlaneseq
    %v192 = vshrl.u32 %v191, 7
    %v193 = vsub.s32 %v190, %v192
    %v194 = vrot.slane %v183, %v193
    %v196 = vunpack.c.l.s4 1983009808
    %v197 = vunpack.c.0.s8 %v196
    %v198 = vlaneseq
    %v199 = vshrl.u32 %v198, 7
    %v200 = vsub.s32 %v197, %v199
    %v201 = vrot.slane %v187, %v200
    %v202 = vcombine.high %v185, 0.0
    %v204 = vunpack.c.l.s4 1983009808
    %v205 = vunpack.c.0.s8 %v204
    %v206 = vlaneseq
    %v207 = vshrl.u32 %v206, 7
    %v208 = vsub.s32 %v205, %v207
    %v209 = vrot.slane %v185, %v208
    %v211 = vunpack.c.l.s4 1983009808
    %v212 = vunpack.c.0.s8 %v211
    %v213 = vlaneseq
    %v214 = vshrl.u32 %v213, 7
    %v215 = vsub.s32 %v212, %v214
    %v216 = vrot.slane %v202, %v215
    %v217 = vcombine.low %v194, %v209
    %v218 = vcombine.high %v194, %v209
    %v220 = vunpack.c.l.s4 1934713408
    %v221 = vunpack.c.0.s8 %v220
    %v222 = vlaneseq
    %v223 = vshrl.u32 %v222, 7
    %v224 = vsub.s32 %v221, %v223
    %v225 = vrot.slane %v217, %v224
    %v227 = vunpack.c.l.s4 1934713408
    %v228 = vunpack.c.0.s8 %v227
    %v229 = vlaneseq
    %v230 = vshrl.u32 %v229, 7
    %v231 = vsub.s32 %v228, %v230
    %v232 = vrot.slane %v218, %v231
    %v233 = vcombine.low %v201, %v216
    %v234 = vcombine.high %v201, %v216
    %v236 = vunpack.c.l.s4 1934713408
    %v237 = vunpack.c.0.s8 %v236
    %v238 = vlaneseq
    %v239 = vshrl.u32 %v238, 7
    %v240 = vsub.s32 %v237, %v239
    %v241 = vrot.slane %v233, %v240
    %v243 = vunpack.c.l.s4 1934713408
    %v244 = vunpack.c.0.s8 %v243
    %v245 = vlaneseq
    %v246 = vshrl.u32 %v245, 7
    %v247 = vsub.s32 %v244, %v246
    %v248 = vrot.slane %v234, %v247
    %v249 = vcombine.high %v225, 0.0
    %v250 = vcombine.high %v232, 0.0
    %v251 = vcombine.high %v241, 0.0
    %v252 = vcombine.high %v248, 0.0
    %v253 = vcombine.high %v184, 0.0
    %v255 = vunpack.c.l.s4 1983009808
    %v256 = vunpack.c.0.s8 %v255
    %v257 = vlaneseq
    %v258 = vshrl.u32 %v257, 7
    %v259 = vsub.s32 %v256, %v258
    %v260 = vrot.slane %v184, %v259
    %v262 = vunpack.c.l.s4 1983009808
    %v263 = vunpack.c.0.s8 %v262
    %v264 = vlaneseq
    %v265 = vshrl.u32 %v264, 7
    %v266 = vsub.s32 %v263, %v265
    %v267 = vrot.slane %v253, %v266
    %v268 = vcombine.high %v186, 0.0
    %v270 = vunpack.c.l.s4 1983009808
    %v271 = vunpack.c.0.s8 %v270
    %v272 = vlaneseq
    %v273 = vshrl.u32 %v272, 7
    %v274 = vsub.s32 %v271, %v273
    %v275 = vrot.slane %v186, %v274
    %v277 = vunpack.c.l.s4 1983009808
    %v278 = vunpack.c.0.s8 %v277
    %v279 = vlaneseq
    %v280 = vshrl.u32 %v279, 7
    %v281 = vsub.s32 %v278, %v280
    %v282 = vrot.slane %v268, %v281
    %v283 = vcombine.low %v260, %v275
    %v284 = vcombine.high %v260, %v275
    %v286 = vunpack.c.l.s4 1934713408
    %v287 = vunpack.c.0.s8 %v286
    %v288 = vlaneseq
    %v289 = vshrl.u32 %v288, 7
    %v290 = vsub.s32 %v287, %v289
    %v291 = vrot.slane %v283, %v290
    %v293 = vunpack.c.l.s4 1934713408
    %v294 = vunpack.c.0.s8 %v293
    %v295 = vlaneseq
    %v296 = vshrl.u32 %v295, 7
    %v297 = vsub.s32 %v294, %v296
    %v298 = vrot.slane %v284, %v297
    %v299 = vcombine.low %v267, %v282
    %v300 = vcombine.high %v267, %v282
    %v302 = vunpack.c.l.s4 1934713408
    %v303 = vunpack.c.0.s8 %v302
    %v304 = vlaneseq
    %v305 = vshrl.u32 %v304, 7
    %v306 = vsub.s32 %v303, %v305
    %v307 = vrot.slane %v299, %v306
    %v309 = vunpack.c.l.s4 1934713408
    %v310 = vunpack.c.0.s8 %v309
    %v311 = vlaneseq
    %v312 = vshrl.u32 %v311, 7
    %v313 = vsub.s32 %v310, %v312
    %v314 = vrot.slane %v300, %v313
    %v315 = vcombine.high %v291, 0.0
    %v316 = vcombine.high %v298, 0.0
    %v317 = vcombine.high %v307, 0.0
    %v318 = vcombine.high %v314, 0.0
    %v319 = vsel %vm88, %v225, 0.0
    %v320 = vsel %vm88, %v291, 0.0
    %v321 = vadd.f32 %v319, %v320
    %322 = vadd.xlane.f32.xlu0 %v321
    %v323 = vpop.xlane.xlu0 %322
    %v324 = vsel %vm88, %v249, 0.0
    %v325 = vsel %vm88, %v315, 0.0
    %v326 = vadd.f32 %v324, %v325
    %327 = vadd.xlane.f32.xlu0 %v326
    %v328 = vpop.xlane.xlu0 %327
    %v329 = vsel %vm88, %v232, 0.0
    %v330 = vsel %vm88, %v298, 0.0
    %v331 = vadd.f32 %v329, %v330
    %332 = vadd.xlane.f32.xlu0 %v331
    %v333 = vpop.xlane.xlu0 %332
    %v334 = vsel %vm88, %v250, 0.0
    %v335 = vsel %vm88, %v316, 0.0
    %v336 = vadd.f32 %v334, %v335
    %337 = vadd.xlane.f32.xlu0 %v336
    %v338 = vpop.xlane.xlu0 %337
    %v339 = vsel %vm88, %v241, 0.0
    %v340 = vsel %vm88, %v307, 0.0
    %v341 = vadd.f32 %v339, %v340
    %342 = vadd.xlane.f32.xlu0 %v341
    %v343 = vpop.xlane.xlu0 %342
    %v344 = vsel %vm88, %v251, 0.0
    %v345 = vsel %vm88, %v317, 0.0
    %v346 = vadd.f32 %v344, %v345
    %347 = vadd.xlane.f32.xlu0 %v346
    %v348 = vpop.xlane.xlu0 %347
    %v349 = vsel %vm88, %v248, 0.0
    %v350 = vsel %vm88, %v314, 0.0
    %v351 = vadd.f32 %v349, %v350
    %352 = vadd.xlane.f32.xlu0 %v351
    %v353 = vpop.xlane.xlu0 %352
    %v354 = vsel %vm88, %v252, 0.0
    %v355 = vsel %vm88, %v318, 0.0
    %v356 = vadd.f32 %v354, %v355
    %357 = vadd.xlane.f32.xlu0 %v356
    %v358 = vpop.xlane.xlu0 %357
    %v359 = vrcp.pop 256.0
    %v360 = vmul.f32 %v323, %v359
    %v361 = vmul.f32 %v328, %v359
    %v362 = vmul.f32 %v333, %v359
    %v363 = vmul.f32 %v338, %v359
    %v364 = vmul.f32 %v343, %v359
    %v365 = vmul.f32 %v348, %v359
    %v366 = vmul.f32 %v353, %v359
    %v367 = vmul.f32 %v358, %v359
    %v368 = vpack.c.bf16 %v360, %v360
    %v369 = vpack.c.bf16 %v361, %v361
    %v370 = vpack.c.bf16 %v362, %v362
    %v371 = vpack.c.bf16 %v363, %v363
    %v372 = vpack.c.bf16 %v364, %v364
    %v373 = vpack.c.bf16 %v365, %v365
    %v374 = vpack.c.bf16 %v366, %v366
    %v375 = vpack.c.bf16 %v367, %v367
    %v376 = vlaneseq
    %v377 = vshrl.u32 %v376, 7
    %v378 = vsub.s32 0, %v377
    %v379 = vrot.slane %v18, %v378
    %v388 = vunpack.c.l.b16 %v368
    %v389 = vunpack.c.l.b16 %v369
    %v390 = vunpack.c.l.b16 %v370
    %v391 = vunpack.c.l.b16 %v371
    %v392 = vunpack.c.l.b16 %v372
    %v393 = vunpack.c.l.b16 %v373
    %v394 = vunpack.c.l.b16 %v374
    %v395 = vunpack.c.l.b16 %v375
    %v396 = vlaneseq
    %v397 = vand.u32 %v396, 127
    %v398 = vlaneseq
    %v399 = vshrl.u32 %v398, 7
    %v400 = vsub.s32 %v397, %v399
    %v401 = vrot.slane %v388, %v400
    %v402 = vlaneseq
    %v403 = vshrl.u32 %v402, 7
    %v404 = vsub.s32 %v397, %v403
    %v405 = vrot.slane %v389, %v404
    %v406 = vlaneseq
    %v407 = vshrl.u32 %v406, 7
    %v408 = vsub.s32 %v397, %v407
    %v409 = vrot.slane %v390, %v408
    %v410 = vlaneseq
    %v411 = vshrl.u32 %v410, 7
    %v412 = vsub.s32 %v397, %v411
    %v413 = vrot.slane %v391, %v412
    %v414 = vlaneseq
    %v415 = vshrl.u32 %v414, 7
    %v416 = vsub.s32 %v397, %v415
    %v417 = vrot.slane %v392, %v416
    %v418 = vlaneseq
    %v419 = vshrl.u32 %v418, 7
    %v420 = vsub.s32 %v397, %v419
    %v421 = vrot.slane %v393, %v420
    %v422 = vlaneseq
    %v423 = vshrl.u32 %v422, 7
    %v424 = vsub.s32 %v397, %v423
    %v425 = vrot.slane %v394, %v424
    %v426 = vlaneseq
    %v427 = vshrl.u32 %v426, 7
    %v428 = vsub.s32 %v397, %v427
    %v429 = vrot.slane %v395, %v428
    %vm430 = vcmask 1041409
    %v431 = vsel %vm430, %v405, %v401
    %vm432 = vcmask 1042434
    %v433 = vsel %vm432, %v409, %v431
    %vm434 = vcmask 1043459
    %v435 = vsel %vm434, %v413, %v433
    %vm436 = vcmask 1044484
    %v437 = vsel %vm436, %v417, %v435
    %vm438 = vcmask 1045509
    %v439 = vsel %vm438, %v421, %v437
    %vm440 = vcmask 1046534
    %v441 = vsel %vm440, %v425, %v439
    %vm442 = vcmask 1047559
    %v443 = vsel %vm442, %v429, %v441
    %v444 = vpack.c.b16 %v443, %v443
    %446 = vxpose.xlu0.c.b16.start [1/8] %v444, 128
    %447 = vxpose.xlu0.c.b16.cont [2/8] 0, 128
    %448 = vxpose.xlu0.c.b16.cont [3/8] 0, 128
    %449 = vxpose.xlu0.c.b16.cont [4/8] 0, 128
    %450 = vxpose.xlu0.c.b16.cont [5/8] 0, 128
    %451 = vxpose.xlu0.c.b16.cont [6/8] 0, 128
    %452 = vxpose.xlu0.c.b16.cont [7/8] 0, 128
    %453 = vxpose.xlu0.c.b16.end [8/8] 0, 128
    %v454 = vpop.trf.xlu0
    %v455 = vpop.trf.xlu0
    %v456 = vpop.trf.xlu0
    %v457 = vpop.trf.xlu0
    %v458 = vpop.trf.xlu0
    %v459 = vpop.trf.xlu0
    %v460 = vpop.trf.xlu0
    %v461 = vpop.trf.xlu0
    %v463 = vunpack.c.l.b16 %v16
    %v464 = vpack.c.b16 %v463, %v463
    %465 = vrot.lane.b32.xlu0 %v464, 92
    %v466 = vpop.permute.xlu0 %465
    %468 = vrot.lane.b32.xlu0 %v379, 127
    %v469 = vpop.permute.xlu0 %468
    %vm471 = vcmask 64512
    %v473 = vsel %vm471, %v454, 0
    %vm475 = vcmask 1043456
    %v477 = vsel %vm475, %v466, 0
    %479 = vmatprep.subr.bf16.mxu0 0
    %480 = vmatpush1.bf16.msra.mxu0 %v477
    %481 = vmatprep.subr.bf16.mxu0 0
    %482 = vmatpush1.bf16.msra.mxu0 0
    %483 = vmatprep.subr.bf16.mxu0 0
    %484 = vmatpush1.bf16.msra.mxu0 0
    %485 = vmatprep.subr.bf16.mxu0 0
    %486 = vmatpush1.bf16.msra.mxu0 0
    %487 = vmatprep.subr.bf16.mxu0 0
    %488 = vmatpush1.bf16.msra.mxu0 0
    %489 = vmatprep.subr.bf16.mxu0 0
    %490 = vmatpush1.bf16.msra.mxu0 0
    %491 = vmatprep.subr.bf16.mxu0 0
    %492 = vmatpush1.bf16.msra.mxu0 0
    %493 = vmatprep.subr.bf16.mxu0 0
    %494 = vmatpush1.bf16.msra.mxu0 0
    %495 = vmatprep.subr.bf16.mxu0 0
    %496 = vmatpush1.bf16.msra.mxu0 0
    %497 = vmatprep.subr.bf16.mxu0 0
    %498 = vmatpush1.bf16.msra.mxu0 0
    %499 = vmatprep.subr.bf16.mxu0 0
    %500 = vmatpush1.bf16.msra.mxu0 0
    %501 = vmatprep.subr.bf16.mxu0 0
    %502 = vmatpush1.bf16.msra.mxu0 0
    %503 = vmatprep.subr.bf16.mxu0 0
    %504 = vmatpush1.bf16.msra.mxu0 0
    %505 = vmatprep.subr.bf16.mxu0 0
    %506 = vmatpush1.bf16.msra.mxu0 0
    %507 = vmatprep.subr.bf16.mxu0 0
    %508 = vmatpush1.bf16.msra.mxu0 0
    %509 = vmatprep.subr.bf16.mxu0 0
    %510 = vmatpush1.bf16.msra.mxu0 0
    %511 = vmatprep.mubr.bf16.mxu0 0
    %512 = vmatmul.mubr.bf16.gmra.mrb[0].mxu0 %v473
    %v513 = vpop.f32.mrb[0].mxu0
    %v514 = vadd.f32 %v469, %v513
    %v515 = vpop.f32.mrb[0].mxu0
    %v516 = vpop.f32.mrb[0].mxu0
    %v517 = vpop.f32.mrb[0].mxu0
    %518 = vdwg.mxu0
    %v519 = vpack.c.bf16 %v514, %v514
    %vm520 = vcmask 73728
    %521 = vst.msk [vmem:[#allocation2] sm:$0x1] %vm520, %v519
    // Predicated region
    $region14: #{trace_wrape_forward.1} parent=1 // pred_check
      _
    $region15: #{trace_wrape_forward.1} parent=1 // pred_check_branch
      %523 = sbr.rel (0) target = $region17
    $region16: #{trace_wrape_forward.1} parent=1 // pred_region
      %s525 = ssub.s32 16, 16
      %526 = vsyncadd [#allocation3], %s525
      %s528 = sshll.u32 [#allocation2], 4
      %s529 = int_to_ptr.vmem [resolvable:$true] %s528
      %531 = dma.vmem_to_hbm [thread:$0]  %s529, 16, %s3, [#allocation3]
    $region17: #{trace_wrape_forward.1} parent=1 // pred_fallthru
      _
    // Predicated region
    $region18: #{trace_wrape_forward.1} parent=1 // pred_check
      _
    $region19: #{trace_wrape_forward.1} parent=1 // pred_check_branch
      %533 = sbr.rel (0) target = $region21
    $region20: #{trace_wrape_forward.1} parent=1 // pred_region
      %534 = dma.done [#allocation3], 16
    $region21: #{trace_wrape_forward.1} parent=1 // pred_fallthru
      _
    %535 = vsyncpa [#allocation3], 1

</llo_original>
